<compile_context>
chip_gen: v7x
topology: tpu7x:2x2x1
jax: 0.10.0
libtpu: 0.0.40
codegen_flags: <defaults>
</compile_context>

<pallas_src>
import functools

import jax
import jax.numpy as jnp
from jax.experimental import pallas as pl
from jax.experimental.pallas import tpu as pltpu

D_IN, HID, D_OUT = 2, 32, 3


def _make_kernel(pred_idx: int):
    """Fused tanh-MLP forward (+ analytic vorticity jvp) for a static pred_idx."""

    def kernel(xt_ref, w1t_ref, b1_ref, w2t_ref, b2_ref, w3e_ref, b3e_ref, o_ref):
        xt = xt_ref[...].astype(jnp.float32)          # (D_IN, TM)  batch on lanes
        w1t = w1t_ref[...]                            # (HID, D_IN)
        b1 = b1_ref[...]                              # (HID, 1)
        w2t = w2t_ref[...]                            # (HID, HID)
        b2 = b2_ref[...]                              # (HID, 1)
        w3e = w3e_ref[...]                            # (C, HID)  pre-pruned
        b3e = b3e_ref[...]                            # (C, 1)

        # ---- layer 1: K=2 "matmul" as VPU broadcast-FMAs (MXU skipped) -----
        x0 = xt[0:1, :]                               # (1, TM)
        x1 = xt[1:2, :]
        z1 = w1t[:, 0:1] * x0 + w1t[:, 1:2] * x1 + b1  # (HID, TM)
        h1 = jnp.tanh(z1)

        # ---- layer 2: (HID,HID) @ (HID,TM) on the MXU -----------------------
        z2 = jnp.dot(w2t, h1, preferred_element_type=jnp.float32) + b2
        h2 = jnp.tanh(z2)                             # (HID, TM)

        if pred_idx == 4:
            # Forward-mode vorticity dv/dx - du/dy via analytic tanh' chain.
            omh1 = 1.0 - h1 * h1
            omh2 = 1.0 - h2 * h2
            dh1_x = omh1 * w1t[:, 0:1]                # d h1 / d x  (HID, TM)
            dh1_y = omh1 * w1t[:, 1:2]                # d h1 / d y
            dh2_x = omh2 * jnp.dot(w2t, dh1_x, preferred_element_type=jnp.float32)
            dh2_y = omh2 * jnp.dot(w2t, dh1_y, preferred_element_type=jnp.float32)
            # w3e row 0 = w3[:,1]^T (v column), row 1 = -w3[:,0]^T (u column),
            # so the sum below is exactly dv/dx - du/dy.
            out = (jnp.dot(w3e[0:1, :], dh2_x, preferred_element_type=jnp.float32)
                   + jnp.dot(w3e[1:2, :], dh2_y, preferred_element_type=jnp.float32))
        else:
            u = jnp.dot(w3e, h2, preferred_element_type=jnp.float32) + b3e  # (C, TM)
            if pred_idx == 3:
                out = jnp.sqrt(u[0:1, :] ** 2 + u[1:2, :] ** 2)
            else:
                out = u                               # already the selected column

        o_ref[...] = out.astype(o_ref.dtype)          # (1, TM) lane-dense store

    return kernel


@functools.partial(jax.jit, static_argnames=("pred_idx", "tm"))
def net_pred_wrapper(x, params, pred_idx: int, tm: int = 2048):
    """Pallas NetPredWrapper.forward; x is (N, 2), returns (N, 1) float32."""
    n = x.shape[0]
    w1, b1, w2, b2, w3, b3 = params

    # ---- prune/pack the last layer for this pred_idx (wrapper-side, once) ---
    if pred_idx in (0, 1, 2):
        w3e = w3[:, pred_idx:pred_idx + 1].T                           # (1, HID)
        b3e = b3[:, pred_idx:pred_idx + 1].reshape(1, 1)
    elif pred_idx == 3:
        w3e = w3[:, 0:2].T                                             # (2, HID)
        b3e = b3[:, 0:2].reshape(2, 1)
    elif pred_idx == 4:
        w3e = jnp.concatenate([w3[:, 1:2].T, -w3[:, 0:1].T], axis=0)   # (2, HID)
        b3e = jnp.zeros((2, 1), jnp.float32)                           # unused
    else:
        raise ValueError(f"pred_idx must be in 0..4, got {pred_idx}")
    c = int(w3e.shape[0])

    # Transposed ("CN") operands: batch on lanes, features on sublanes.
    w1t, b1t = w1.T, b1.reshape(HID, 1)
    w2t, b2t = w2.T, b2.reshape(HID, 1)

    # ---- batch tiling: lane-multiple tile, pad batch instead of asserting ---
    n_lane = ((n + 127) // 128) * 128
    tm_eff = min(tm, n_lane)
    n_pad = ((n + tm_eff - 1) // tm_eff) * tm_eff
    xt = x.T.astype(jnp.float32)                      # (D_IN, N)
    if n_pad != n:
        xt = jnp.pad(xt, ((0, 0), (0, n_pad - n)))

    rep = lambda i: (0, 0)   # constant block index => weights are not re-DMA'd

    out = pl.pallas_call(
        _make_kernel(pred_idx),
        out_shape=jax.ShapeDtypeStruct((1, n_pad), jnp.float32),
        grid_spec=pltpu.PrefetchScalarGridSpec(
            num_scalar_prefetch=0,
            grid=(n_pad // tm_eff,),
            in_specs=[
                pl.BlockSpec((D_IN, tm_eff), lambda i: (0, i)),   # x tile, lane-major
                pl.BlockSpec((HID, D_IN), rep),
                pl.BlockSpec((HID, 1), rep),
                pl.BlockSpec((HID, HID), rep),
                pl.BlockSpec((HID, 1), rep),
                pl.BlockSpec((c, HID), rep),
                pl.BlockSpec((c, 1), rep),
            ],
            out_specs=pl.BlockSpec((1, tm_eff), lambda i: (0, i)),  # lane-dense out
        ),
        compiler_params=pltpu.CompilerParams(
            dimension_semantics=("parallel",),          # v7x: shard batch over 2 TCs
            vmem_limit_bytes=32 * 1024 * 1024),         # safe on v5e/v6e/v7x
    )(xt, w1t, b1t, w2t, b2t, w3e, b3e)

    # (1, n_pad) -> (n_pad, 1) -> trim padding.
    return out.reshape(n_pad, 1)[:n]


# ----------------------------- pure-JAX reference ----------------------------
def _net_ref(x, params):
    w1, b1, w2, b2, w3, b3 = params
    h1 = jnp.tanh(x @ w1 + b1)
    h2 = jnp.tanh(h1 @ w2 + b2)
    return h2 @ w3 + b3


def _forward_ref(x, params, pred_idx):
    u = _net_ref(x, params)
    if pred_idx == 3:
        return jnp.sqrt(u[:, 0] ** 2 + u[:, 1] ** 2).reshape(-1, 1)
    if pred_idx == 4:
        jac = jax.vmap(jax.jacfwd(lambda xi: _net_ref(xi[None, :], params)[0]))(x)
        dv_x = jac[:, 1, 0]
        du_y = jac[:, 0, 1]
        return (dv_x - du_y).reshape(-1, 1)
    return u[:, pred_idx].reshape(-1, 1)


# ------------------------------------ main -----------------------------------
if __name__ == "__main__":
    key = jax.random.PRNGKey(0)
    k_x, k1, k2, k3, kb1, kb2, kb3 = jax.random.split(key, 7)

    # Deterministic (Glorot-ish) parameters for the [2, 32, 32, 3] tanh MLP.
    params = (
        jax.random.normal(k1, (D_IN, HID), jnp.float32) * (1.0 / jnp.sqrt(D_IN)),
        jax.random.normal(kb1, (1, HID), jnp.float32) * 0.01,
        jax.random.normal(k2, (HID, HID), jnp.float32) * (1.0 / jnp.sqrt(HID)),
        jax.random.normal(kb2, (1, HID), jnp.float32) * 0.01,
        jax.random.normal(k3, (HID, D_OUT), jnp.float32) * (1.0 / jnp.sqrt(HID)),
        jax.random.normal(kb3, (1, D_OUT), jnp.float32) * 0.01,
    )

    for n_test in (256, 200):   # 200 exercises the padding path
        x = jax.random.uniform(k_x, (n_test, D_IN), jnp.float32,
                               minval=-1.0, maxval=1.0)
        for pred_idx in (0, 1, 2, 3, 4):
            out = net_pred_wrapper(x, params, pred_idx=pred_idx)
            out = jax.block_until_ready(out)
            ref = _forward_ref(x, params, pred_idx)
            assert out.shape == (n_test, 1), out.shape
            assert jnp.allclose(out, ref, atol=1e-4, rtol=1e-4), (
                f"mismatch for n={n_test} pred_idx={pred_idx}: "
                f"max err {jnp.max(jnp.abs(out - ref))}")

    print("KERNEL_OK")
</pallas_src>

<mosaic_0001>
module attributes {stable_mosaic.version = 11 : i64} {
  func.func @kernel(%arg0: i32, %arg1: memref<2x256xf32, #tpu.memory_space<vmem>>, %arg2: memref<32x2xf32, #tpu.memory_space<vmem>>, %arg3: memref<32x1xf32, #tpu.memory_space<vmem>>, %arg4: memref<32x32xf32, #tpu.memory_space<vmem>>, %arg5: memref<32x1xf32, #tpu.memory_space<vmem>>, %arg6: memref<1x32xf32, #tpu.memory_space<vmem>>, %arg7: memref<1x1xf32, #tpu.memory_space<vmem>>, %arg8: memref<1x256xf32, #tpu.memory_space<vmem>>) attributes {dimension_semantics = [#tpu.dimension_semantics<parallel>], iteration_bounds = array<i64: 1>, scalar_prefetch = 0 : i64, scratch_operands = 0 : i64, tpu.core_type = #tpu.core_type<tc>, window_params = [{transform_indices = @transform_0, window_bounds = array<i64: 2, 256>}, {pipeline_mode = #tpu.pipeline_mode<synchronous>, transform_indices = @transform_1, window_bounds = array<i64: 32, 2>}, {pipeline_mode = #tpu.pipeline_mode<synchronous>, transform_indices = @transform_2, window_bounds = array<i64: 32, 1>}, {pipeline_mode = #tpu.pipeline_mode<synchronous>, transform_indices = @transform_3, window_bounds = array<i64: 32, 32>}, {pipeline_mode = #tpu.pipeline_mode<synchronous>, transform_indices = @transform_4, window_bounds = array<i64: 32, 1>}, {pipeline_mode = #tpu.pipeline_mode<synchronous>, transform_indices = @transform_5, window_bounds = array<i64: 1, 32>}, {pipeline_mode = #tpu.pipeline_mode<synchronous>, transform_indices = @transform_6, window_bounds = array<i64: 1, 1>}, {transform_indices = @transform_7, window_bounds = array<i64: 1, 256>}]} {
    %c0 = arith.constant 0 : index
    %c0_0 = arith.constant 0 : index
    %0 = vector.load %arg1[%c0, %c0_0] : memref<2x256xf32, #tpu.memory_space<vmem>>, vector<2x256xf32>
    %c0_1 = arith.constant 0 : index
    %c0_2 = arith.constant 0 : index
    %1 = vector.load %arg2[%c0_1, %c0_2] : memref<32x2xf32, #tpu.memory_space<vmem>>, vector<32x2xf32>
    %c0_3 = arith.constant 0 : index
    %c0_4 = arith.constant 0 : index
    %2 = vector.load %arg3[%c0_3, %c0_4] : memref<32x1xf32, #tpu.memory_space<vmem>>, vector<32x1xf32>
    %c0_5 = arith.constant 0 : index
    %c0_6 = arith.constant 0 : index
    %3 = vector.load %arg4[%c0_5, %c0_6] : memref<32x32xf32, #tpu.memory_space<vmem>>, vector<32x32xf32>
    %c0_7 = arith.constant 0 : index
    %c0_8 = arith.constant 0 : index
    %4 = vector.load %arg5[%c0_7, %c0_8] : memref<32x1xf32, #tpu.memory_space<vmem>>, vector<32x1xf32>
    %c0_9 = arith.constant 0 : index
    %c0_10 = arith.constant 0 : index
    %5 = vector.load %arg6[%c0_9, %c0_10] : memref<1x32xf32, #tpu.memory_space<vmem>>, vector<1x32xf32>
    %c0_11 = arith.constant 0 : index
    %c0_12 = arith.constant 0 : index
    %6 = vector.load %arg7[%c0_11, %c0_12] : memref<1x1xf32, #tpu.memory_space<vmem>>, vector<1x1xf32>
    %7 = vector.extract_strided_slice %0 {offsets = [0, 0], sizes = [1, 256], strides = [1, 1]} : vector<2x256xf32> to vector<1x256xf32>
    %8 = vector.extract_strided_slice %0 {offsets = [1, 0], sizes = [1, 256], strides = [1, 1]} : vector<2x256xf32> to vector<1x256xf32>
    %9 = vector.extract_strided_slice %1 {offsets = [0, 0], sizes = [32, 1], strides = [1, 1]} : vector<32x2xf32> to vector<32x1xf32>
    %10 = vector.broadcast %9 : vector<32x1xf32> to vector<32x256xf32>
    %11 = vector.broadcast %7 : vector<1x256xf32> to vector<32x256xf32>
    %12 = arith.mulf %10, %11 : vector<32x256xf32>
    %13 = vector.extract_strided_slice %1 {offsets = [0, 1], sizes = [32, 1], strides = [1, 1]} : vector<32x2xf32> to vector<32x1xf32>
    %14 = vector.broadcast %13 : vector<32x1xf32> to vector<32x256xf32>
    %15 = vector.broadcast %8 : vector<1x256xf32> to vector<32x256xf32>
    %16 = arith.mulf %14, %15 : vector<32x256xf32>
    %17 = arith.addf %12, %16 : vector<32x256xf32>
    %18 = vector.broadcast %2 : vector<32x1xf32> to vector<32x256xf32>
    %19 = arith.addf %17, %18 : vector<32x256xf32>
    %20 = math.tanh %19 : vector<32x256xf32>
    %cst = arith.constant dense<0.000000e+00> : vector<32x256xf32>
    %21 = tpu.matmul %3, %20, %cst {dimension_numbers = #tpu.dot_dimension_numbers<[1], [0], [0], [1], [0, 0, 1, 1], [], []>} : vector<32x32xf32>, vector<32x256xf32>, vector<32x256xf32> -> vector<32x256xf32>
    %22 = vector.broadcast %4 : vector<32x1xf32> to vector<32x256xf32>
    %23 = arith.addf %21, %22 : vector<32x256xf32>
    %24 = math.tanh %23 : vector<32x256xf32>
    %cst_13 = arith.constant dense<0.000000e+00> : vector<1x256xf32>
    %25 = tpu.matmul %5, %24, %cst_13 {dimension_numbers = #tpu.dot_dimension_numbers<[1], [0], [0], [1], [0, 0, 1, 1], [], []>} : vector<1x32xf32>, vector<32x256xf32>, vector<1x256xf32> -> vector<1x256xf32>
    %26 = vector.broadcast %6 : vector<1x1xf32> to vector<1x256xf32>
    %27 = arith.addf %25, %26 : vector<1x256xf32>
    %c0_14 = arith.constant 0 : index
    %c0_15 = arith.constant 0 : index
    %28 = vector.load %arg8[%c0_14, %c0_15] : memref<1x256xf32, #tpu.memory_space<vmem>>, vector<1x256xf32>
    tpu.vector_store %arg8[%c0_14, %c0_15], %27 {strides = array<i32>} : memref<1x256xf32, #tpu.memory_space<vmem>>, vector<1x256xf32>,
    return
  }
  func.func @transform_0(%arg0: i32) -> (i32, i32) {
    %c0_i32 = arith.constant 0 : i32
    %c0_i32_0 = arith.constant 0 : i32
    return %c0_i32, %arg0 : i32, i32
  }
  func.func @transform_1(%arg0: i32) -> (i32, i32) {
    %c0_i32 = arith.constant 0 : i32
    %c0_i32_0 = arith.constant 0 : i32
    %c0_i32_1 = arith.constant 0 : i32
    return %c0_i32, %c0_i32_0 : i32, i32
  }
  func.func @transform_2(%arg0: i32) -> (i32, i32) {
    %c0_i32 = arith.constant 0 : i32
    %c0_i32_0 = arith.constant 0 : i32
    %c0_i32_1 = arith.constant 0 : i32
    return %c0_i32, %c0_i32_0 : i32, i32
  }
  func.func @transform_3(%arg0: i32) -> (i32, i32) {
    %c0_i32 = arith.constant 0 : i32
    %c0_i32_0 = arith.constant 0 : i32
    %c0_i32_1 = arith.constant 0 : i32
    return %c0_i32, %c0_i32_0 : i32, i32
  }
  func.func @transform_4(%arg0: i32) -> (i32, i32) {
    %c0_i32 = arith.constant 0 : i32
    %c0_i32_0 = arith.constant 0 : i32
    %c0_i32_1 = arith.constant 0 : i32
    return %c0_i32, %c0_i32_0 : i32, i32
  }
  func.func @transform_5(%arg0: i32) -> (i32, i32) {
    %c0_i32 = arith.constant 0 : i32
    %c0_i32_0 = arith.constant 0 : i32
    %c0_i32_1 = arith.constant 0 : i32
    return %c0_i32, %c0_i32_0 : i32, i32
  }
  func.func @transform_6(%arg0: i32) -> (i32, i32) {
    %c0_i32 = arith.constant 0 : i32
    %c0_i32_0 = arith.constant 0 : i32
    %c0_i32_1 = arith.constant 0 : i32
    return %c0_i32, %c0_i32_0 : i32, i32
  }
  func.func @transform_7(%arg0: i32) -> (i32, i32) {
    %c0_i32 = arith.constant 0 : i32
    %c0_i32_0 = arith.constant 0 : i32
    return %c0_i32, %arg0 : i32, i32
  }
}

</mosaic_0001>

<llo_original>
// kernel: net_pred_wrapper.1
$region0: #{net_pred_wrapper.1}
  #allocation0 [shape = 'u32[]', space=smem, size = 0x4, offset = 0x4, fixed_abs, tag = 'smem constant byte address 0x4 - core index']
  #allocation1 [shape = 'u32[144,128]{1,0:T(1,128)}', space=vmem, size = 0x12000, scoped, tag = 'internal scratch']
  #allocation2 [shape = 'f32[1,1]{1,0:T(1,128)S(1)}', space=vmem, size = 0x200, scoped, tag = 'scoped memory for net_pred_wrapper.1']
  %s0 = inlined_call_operand.vmem [shape: f32[2,256], index: 0, kind: input, shape index: {}]
  %s1 = inlined_call_operand.vmem [shape: f32[32,2], index: 1, kind: input, shape index: {}]
  %s2 = inlined_call_operand.vmem [shape: f32[32,1], index: 2, kind: input, shape index: {}]
  %s3 = inlined_call_operand.vmem [shape: f32[32,32], index: 3, kind: input, shape index: {}]
  %s4 = inlined_call_operand.vmem [shape: f32[32,1], index: 4, kind: input, shape index: {}]
  %s5 = inlined_call_operand.vmem [shape: f32[1,32], index: 5, kind: input, shape index: {}]
  %s6 = inlined_call_operand.<no memory space> [shape: f32[1,1], index: 6, kind: input, shape index: {}]
  %s7 = inlined_call_operand.hbm [shape: f32[1,256], index: 7, kind: output, shape index: {}]
  %s8 = sld [smem:[#allocation0]]
  $region38: #{net_pred_wrapper.1} parent=0
    _
  %s10 = ssub.s32 1, %s8
  %s11 = scalar_select 0, %s10, %s8
  %v12 = vstv %s6
  %13 = vst [vmem:[#allocation2] sm:$0x1] %v12
  $region1: #{net_pred_wrapper.1} parent=0
    #allocation3 [shape = 'u8[1024]{0}', space=vmem, size = 0x400, scoped, tag = 'output window, operand 0, single buffered']
    #allocation4 [shape = 's32[1]{0}', space=sflag, size = 0x4, scoped, tag = 'scoped memory for net_pred_wrapper.1']
    %14 = vsyncpa [#allocation4], 0
    // Predicated region
    $region2: #{net_pred_wrapper.1} parent=1 // pred_check
      _
    $region3: #{net_pred_wrapper.1} parent=1 // pred_check_branch
      %16 = sbr.rel (0) target = $region5
    $region4: #{net_pred_wrapper.1} parent=1 // pred_region
      _
    $region5: #{net_pred_wrapper.1} parent=1 // pred_fallthru
      _
    // Predicated region
    $region6: #{net_pred_wrapper.1} parent=1 // pred_check
      _
    $region7: #{net_pred_wrapper.1} parent=1 // pred_check_branch
      %18 = sbr.rel (0) target = $region9
    $region8: #{net_pred_wrapper.1} parent=1 // pred_region
      _
    $region9: #{net_pred_wrapper.1} parent=1 // pred_fallthru
      _
    // Predicated region
    $region10: #{net_pred_wrapper.1} parent=1 // pred_check
      _
    $region11: #{net_pred_wrapper.1} parent=1 // pred_check_branch
      %20 = sbr.rel (0) target = $region13
    $region12: #{net_pred_wrapper.1} parent=1 // pred_region
      _
    $region13: #{net_pred_wrapper.1} parent=1 // pred_fallthru
      _
    // Predicated region
    $region14: #{net_pred_wrapper.1} parent=1 // pred_check
      _
    $region15: #{net_pred_wrapper.1} parent=1 // pred_check_branch
      %22 = sbr.rel (0) target = $region17
    $region16: #{net_pred_wrapper.1} parent=1 // pred_region
      _
    $region17: #{net_pred_wrapper.1} parent=1 // pred_fallthru
      _
    // Predicated region
    $region18: #{net_pred_wrapper.1} parent=1 // pred_check
      _
    $region19: #{net_pred_wrapper.1} parent=1 // pred_check_branch
      %24 = sbr.rel (0) target = $region21
    $region20: #{net_pred_wrapper.1} parent=1 // pred_region
      _
    $region21: #{net_pred_wrapper.1} parent=1 // pred_fallthru
      _
    // Predicated region
    $region22: #{net_pred_wrapper.1} parent=1 // pred_check
      _
    $region23: #{net_pred_wrapper.1} parent=1 // pred_check_branch
      %26 = sbr.rel (0) target = $region25
    $region24: #{net_pred_wrapper.1} parent=1 // pred_region
      _
    $region25: #{net_pred_wrapper.1} parent=1 // pred_fallthru
      _
    // Predicated region
    $region26: #{net_pred_wrapper.1} parent=1 // pred_check
      _
    $region27: #{net_pred_wrapper.1} parent=1 // pred_check_branch
      %28 = sbr.rel (0) target = $region29
    $region28: #{net_pred_wrapper.1} parent=1 // pred_region
      _
    $region29: #{net_pred_wrapper.1} parent=1 // pred_fallthru
      _
    %v29 = vld [vmem:[%s0] sm:$0xf]
    %v30 = vld [vmem:[%s1] sm:$0xff]
    %v31 = vld [vmem:[%s1 + $0x8] sm:$0xff]
    %v32 = vld [vmem:[%s1 + $0x10] sm:$0xff]
    %v33 = vld [vmem:[%s1 + $0x18] sm:$0xff]
    %v34 = vld [vmem:[%s2] sm:$0xff]
    %v35 = vld [vmem:[%s2 + $0x8] sm:$0xff]
    %v36 = vld [vmem:[%s2 + $0x10] sm:$0xff]
    %v37 = vld [vmem:[%s2 + $0x18] sm:$0xff]
    %v38 = vld [vmem:[%s3] sm:$0xff]
    %v39 = vld [vmem:[%s3 + $0x8] sm:$0xff]
    %v40 = vld [vmem:[%s3 + $0x10] sm:$0xff]
    %v41 = vld [vmem:[%s3 + $0x18] sm:$0xff]
    %v42 = vld [vmem:[%s4] sm:$0xff]
    %v43 = vld [vmem:[%s4 + $0x8] sm:$0xff]
    %v44 = vld [vmem:[%s4 + $0x10] sm:$0xff]
    %v45 = vld [vmem:[%s4 + $0x18] sm:$0xff]
    %v46 = vld [vmem:[%s5] sm:$0x1]
    %v47 = vld [vmem:[#allocation2] sm:$0x1]
    %49 = vset.pattern.permute.xlu0 0
    %50 = vperm.xlu0 %49, %v30
    %v51 = vpop.permute.xlu0 %50
    %54 = vset.pattern.permute.xlu0 0
    %55 = vperm.xlu0 %54, %v31
    %v56 = vpop.permute.xlu0 %55
    %59 = vset.pattern.permute.xlu0 0
    %60 = vperm.xlu0 %59, %v32
    %v61 = vpop.permute.xlu0 %60
    %64 = vset.pattern.permute.xlu0 0
    %65 = vperm.xlu0 %64, %v33
    %v66 = vpop.permute.xlu0 %65
    %v69 = vlaneseq
    %v70 = vshrl.u32 %v69, 7
    %v71 = vsub.s32 0, %v70
    %v72 = vrot.slane %v29, %v71
    %v73 = vlaneseq
    %v74 = vshrl.u32 %v73, 7
    %v75 = vsub.s32 2, %v74
    %v76 = vrot.slane %v29, %v75
    %v79 = vlaneseq
    %v80 = vshrl.u32 %v79, 7
    %v81 = vsub.s32 0, %v80
    %v82 = vrot.slane %v72, %v81
    %v83 = vlaneseq
    %v84 = vshrl.u32 %v83, 7
    %v85 = vsub.s32 0, %v84
    %v86 = vrot.slane %v76, %v85
    %v87 = vmul.f32 %v51, %v82
    %v88 = vmul.f32 %v51, %v86
    %v89 = vmul.f32 %v56, %v82
    %v90 = vmul.f32 %v56, %v86
    %v91 = vmul.f32 %v61, %v82
    %v92 = vmul.f32 %v61, %v86
    %v93 = vmul.f32 %v66, %v82
    %v94 = vmul.f32 %v66, %v86
    %95 = vset.pattern.permute.xlu0 1
    %96 = vperm.xlu0 %95, %v30
    %v97 = vpop.permute.xlu0 %96
    %99 = vset.pattern.permute.xlu0 1
    %100 = vperm.xlu0 %99, %v31
    %v101 = vpop.permute.xlu0 %100
    %103 = vset.pattern.permute.xlu0 1
    %104 = vperm.xlu0 %103, %v32
    %v105 = vpop.permute.xlu0 %104
    %107 = vset.pattern.permute.xlu0 1
    %108 = vperm.xlu0 %107, %v33
    %v109 = vpop.permute.xlu0 %108
    %v111 = vlaneseq
    %v112 = vshrl.u32 %v111, 7
    %v113 = vsub.s32 1, %v112
    %v114 = vrot.slane %v29, %v113
    %v115 = vlaneseq
    %v116 = vshrl.u32 %v115, 7
    %v117 = vsub.s32 3, %v116
    %v118 = vrot.slane %v29, %v117
    %v121 = vlaneseq
    %v122 = vshrl.u32 %v121, 7
    %v123 = vsub.s32 1, %v122
    %v124 = vrot.slane %v114, %v123
    %v125 = vlaneseq
    %v126 = vshrl.u32 %v125, 7
    %v127 = vsub.s32 1, %v126
    %v128 = vrot.slane %v118, %v127
    %v129 = vmul.f32 %v97, %v124
    %v130 = vmul.f32 %v97, %v128
    %v131 = vmul.f32 %v101, %v124
    %v132 = vmul.f32 %v101, %v128
    %v133 = vmul.f32 %v105, %v124
    %v134 = vmul.f32 %v105, %v128
    %v135 = vmul.f32 %v109, %v124
    %v136 = vmul.f32 %v109, %v128
    %v137 = vadd.f32 %v87, %v129
    %v138 = vadd.f32 %v88, %v130
    %v139 = vadd.f32 %v89, %v131
    %v140 = vadd.f32 %v90, %v132
    %v141 = vadd.f32 %v91, %v133
    %v142 = vadd.f32 %v92, %v134
    %v143 = vadd.f32 %v93, %v135
    %v144 = vadd.f32 %v94, %v136
    %146 = vset.pattern.permute.xlu0 0
    %147 = vperm.xlu0 %146, %v34
    %v148 = vpop.permute.xlu0 %147
    %151 = vset.pattern.permute.xlu0 0
    %152 = vperm.xlu0 %151, %v35
    %v153 = vpop.permute.xlu0 %152
    %156 = vset.pattern.permute.xlu0 0
    %157 = vperm.xlu0 %156, %v36
    %v158 = vpop.permute.xlu0 %157
    %161 = vset.pattern.permute.xlu0 0
    %162 = vperm.xlu0 %161, %v37
    %v163 = vpop.permute.xlu0 %162
    %v165 = vadd.f32 %v137, %v148
    %v166 = vadd.f32 %v138, %v148
    %v167 = vadd.f32 %v139, %v153
    %v168 = vadd.f32 %v140, %v153
    %v169 = vadd.f32 %v141, %v158
    %v170 = vadd.f32 %v142, %v158
    %v171 = vadd.f32 %v143, %v163
    %v172 = vadd.f32 %v144, %v163
    %v173 = vtanh.pop %v165
    %v174 = vtanh.pop %v166
    %v175 = vtanh.pop %v167
    %v176 = vtanh.pop %v168
    %v177 = vtanh.pop %v169
    %v178 = vtanh.pop %v170
    %v179 = vtanh.pop %v171
    %v180 = vtanh.pop %v172
    %182 = vset.pattern.permute.xlu0 0
    %183 = vperm.xlu0 %182, %v42
    %v184 = vpop.permute.xlu0 %183
    %187 = vset.pattern.permute.xlu0 0
    %188 = vperm.xlu0 %187, %v43
    %v189 = vpop.permute.xlu0 %188
    %192 = vset.pattern.permute.xlu0 0
    %193 = vperm.xlu0 %192, %v44
    %v194 = vpop.permute.xlu0 %193
    %197 = vset.pattern.permute.xlu0 0
    %198 = vperm.xlu0 %197, %v45
    %v199 = vpop.permute.xlu0 %198
    %vm201 = vcmask 261120
    %v203 = vsel %vm201, %v38, 0
    %v206 = vsel %vm201, %v39, 0
    %v209 = vsel %vm201, %v40, 0
    %v212 = vsel %vm201, %v41, 0
    %214 = vmatprep.subr.mxu0 %v174
    %215 = vmatpush1.msra.mxu0 %v173
    %216 = vmatprep.subr.mxu0 %v176
    %217 = vmatpush1.msra.mxu0 %v175
    %218 = vmatprep.subr.mxu0 %v178
    %219 = vmatpush1.msra.mxu0 %v177
    %220 = vmatprep.subr.mxu0 %v180
    %221 = vmatpush1.msra.mxu0 %v179
    %222 = vmatprep.subr.mxu0 0.0
    %223 = vmatpush1.msra.mxu0 0.0
    %224 = vmatprep.subr.mxu0 0.0
    %225 = vmatpush1.msra.mxu0 0.0
    %226 = vmatprep.subr.mxu0 0.0
    %227 = vmatpush1.msra.mxu0 0.0
    %228 = vmatprep.subr.mxu0 0.0
    %229 = vmatpush1.msra.mxu0 0.0
    %230 = vmatprep.subr.mxu0 0.0
    %231 = vmatpush1.msra.mxu0 0.0
    %232 = vmatprep.subr.mxu0 0.0
    %233 = vmatpush1.msra.mxu0 0.0
    %234 = vmatprep.subr.mxu0 0.0
    %235 = vmatpush1.msra.mxu0 0.0
    %236 = vmatprep.subr.mxu0 0.0
    %237 = vmatpush1.msra.mxu0 0.0
    %238 = vmatprep.subr.mxu0 0.0
    %239 = vmatpush1.msra.mxu0 0.0
    %240 = vmatprep.subr.mxu0 0.0
    %241 = vmatpush1.msra.mxu0 0.0
    %242 = vmatprep.subr.mxu0 0.0
    %243 = vmatpush1.msra.mxu0 0.0
    %244 = vmatprep.subr.mxu0 0.0
    %245 = vmatpush1.msra.mxu0 0.0
    %246 = vmatprep.subr.mxu0 0.0
    %247 = vmatpush1.msra.mxu0 0.0
    %248 = vmatprep.subr.mxu0 0.0
    %249 = vmatpush1.msra.mxu0 0.0
    %250 = vmatprep.subr.mxu0 0.0
    %251 = vmatpush1.msra.mxu0 0.0
    %252 = vmatprep.subr.mxu0 0.0
    %253 = vmatpush1.msra.mxu0 0.0
    %254 = vmatprep.subr.mxu0 0.0
    %255 = vmatpush1.msra.mxu0 0.0
    %256 = vmatprep.subr.mxu0 0.0
    %257 = vmatpush1.msra.mxu0 0.0
    %258 = vmatprep.subr.mxu0 0.0
    %259 = vmatpush1.msra.mxu0 0.0
    %260 = vmatprep.subr.mxu0 0.0
    %261 = vmatpush1.msra.mxu0 0.0
    %262 = vmatprep.subr.mxu0 0.0
    %263 = vmatpush1.msra.mxu0 0.0
    %264 = vmatprep.subr.mxu0 0.0
    %265 = vmatpush1.msra.mxu0 0.0
    %266 = vmatprep.subr.mxu0 0.0
    %267 = vmatpush1.msra.mxu0 0.0
    %268 = vmatprep.subr.mxu0 0.0
    %269 = vmatpush1.msra.mxu0 0.0
    %270 = vmatprep.subr.mxu0 0.0
    %271 = vmatpush1.msra.mxu0 0.0
    %272 = vmatprep.subr.mxu0 0.0
    %273 = vmatpush1.msra.mxu0 0.0
    %274 = vmatprep.subr.mxu0 0.0
    %275 = vmatpush1.msra.mxu0 0.0
    %276 = vmatprep.subr.mxu0 0.0
    %277 = vmatpush1.msra.mxu0 0.0
    %278 = vmatprep.mubr.f32.mxu0 0.0
    %279 = vmatmul.mubr.f32.gmra.mrb[0].mxu0 %v203
    %v280 = vpop.f32.mrb[0].mxu0
    %v281 = vadd.f32 %v184, %v280
    %v282 = vpop.f32.mrb[0].mxu0
    %v283 = vadd.f32 %v184, %v282
    %284 = vmatprep.mubr.f32.mxu0 0.0
    %285 = vmatmul.mubr.f32.gmra.mrb[0].mxu0 %v206
    %v286 = vpop.f32.mrb[0].mxu0
    %v287 = vadd.f32 %v189, %v286
    %v288 = vpop.f32.mrb[0].mxu0
    %v289 = vadd.f32 %v189, %v288
    %290 = vmatprep.mubr.f32.mxu0 0.0
    %291 = vmatmul.mubr.f32.gmra.mrb[0].mxu0 %v209
    %v292 = vpop.f32.mrb[0].mxu0
    %v293 = vadd.f32 %v194, %v292
    %v294 = vpop.f32.mrb[0].mxu0
    %v295 = vadd.f32 %v194, %v294
    %296 = vmatprep.mubr.f32.mxu0 0.0
    %297 = vmatmul.mubr.f32.gmra.mrb[0].mxu0 %v212
    %v298 = vpop.f32.mrb[0].mxu0
    %v299 = vadd.f32 %v199, %v298
    %v300 = vpop.f32.mrb[0].mxu0
    %v301 = vadd.f32 %v199, %v300
    %302 = vdwg.mxu0
    %v303 = vtanh.pop %v281
    %v304 = vtanh.pop %v283
    %v305 = vtanh.pop %v287
    %v306 = vtanh.pop %v289
    %v307 = vtanh.pop %v293
    %v308 = vtanh.pop %v295
    %v309 = vtanh.pop %v299
    %v310 = vtanh.pop %v301
    %312 = vset.pattern.permute.xlu0 0
    %313 = vperm.xlu0 %312, %v47
    %v314 = vpop.permute.xlu0 %313
    %v316 = vlaneseq
    %v317 = vshrl.u32 %v316, 7
    %v318 = vsub.s32 0, %v317
    %v319 = vrot.slane %v314, %v318
    %v321 = vsel %vm201, %v46, 0
    %323 = vmatprep.subr.mxu0 %v304
    %324 = vmatpush1.msra.mxu0 %v303
    %325 = vmatprep.subr.mxu0 %v306
    %326 = vmatpush1.msra.mxu0 %v305
    %327 = vmatprep.subr.mxu0 %v308
    %328 = vmatpush1.msra.mxu0 %v307
    %329 = vmatprep.subr.mxu0 %v310
    %330 = vmatpush1.msra.mxu0 %v309
    %331 = vmatprep.subr.mxu0 0.0
    %332 = vmatpush1.msra.mxu0 0.0
    %333 = vmatprep.subr.mxu0 0.0
    %334 = vmatpush1.msra.mxu0 0.0
    %335 = vmatprep.subr.mxu0 0.0
    %336 = vmatpush1.msra.mxu0 0.0
    %337 = vmatprep.subr.mxu0 0.0
    %338 = vmatpush1.msra.mxu0 0.0
    %339 = vmatprep.subr.mxu0 0.0
    %340 = vmatpush1.msra.mxu0 0.0
    %341 = vmatprep.subr.mxu0 0.0
    %342 = vmatpush1.msra.mxu0 0.0
    %343 = vmatprep.subr.mxu0 0.0
    %344 = vmatpush1.msra.mxu0 0.0
    %345 = vmatprep.subr.mxu0 0.0
    %346 = vmatpush1.msra.mxu0 0.0
    %347 = vmatprep.subr.mxu0 0.0
    %348 = vmatpush1.msra.mxu0 0.0
    %349 = vmatprep.subr.mxu0 0.0
    %350 = vmatpush1.msra.mxu0 0.0
    %351 = vmatprep.subr.mxu0 0.0
    %352 = vmatpush1.msra.mxu0 0.0
    %353 = vmatprep.subr.mxu0 0.0
    %354 = vmatpush1.msra.mxu0 0.0
    %355 = vmatprep.subr.mxu0 0.0
    %356 = vmatpush1.msra.mxu0 0.0
    %357 = vmatprep.subr.mxu0 0.0
    %358 = vmatpush1.msra.mxu0 0.0
    %359 = vmatprep.subr.mxu0 0.0
    %360 = vmatpush1.msra.mxu0 0.0
    %361 = vmatprep.subr.mxu0 0.0
    %362 = vmatpush1.msra.mxu0 0.0
    %363 = vmatprep.subr.mxu0 0.0
    %364 = vmatpush1.msra.mxu0 0.0
    %365 = vmatprep.subr.mxu0 0.0
    %366 = vmatpush1.msra.mxu0 0.0
    %367 = vmatprep.subr.mxu0 0.0
    %368 = vmatpush1.msra.mxu0 0.0
    %369 = vmatprep.subr.mxu0 0.0
    %370 = vmatpush1.msra.mxu0 0.0
    %371 = vmatprep.subr.mxu0 0.0
    %372 = vmatpush1.msra.mxu0 0.0
    %373 = vmatprep.subr.mxu0 0.0
    %374 = vmatpush1.msra.mxu0 0.0
    %375 = vmatprep.subr.mxu0 0.0
    %376 = vmatpush1.msra.mxu0 0.0
    %377 = vmatprep.subr.mxu0 0.0
    %378 = vmatpush1.msra.mxu0 0.0
    %379 = vmatprep.subr.mxu0 0.0
    %380 = vmatpush1.msra.mxu0 0.0
    %381 = vmatprep.subr.mxu0 0.0
    %382 = vmatpush1.msra.mxu0 0.0
    %383 = vmatprep.subr.mxu0 0.0
    %384 = vmatpush1.msra.mxu0 0.0
    %385 = vmatprep.subr.mxu0 0.0
    %386 = vmatpush1.msra.mxu0 0.0
    %387 = vmatprep.mubr.f32.mxu0 0.0
    %388 = vmatmul.mubr.f32.gmra.mrb[0].mxu0 %v321
    %v389 = vpop.f32.mrb[0].mxu0
    %v390 = vadd.f32 %v319, %v389
    %v391 = vpop.f32.mrb[0].mxu0
    %v392 = vadd.f32 %v319, %v391
    %393 = vdwg.mxu0
    %v396 = vcombine.low %v390, %v392
    %v398 = vunpack.c.l.s4 1966171168
    %v399 = vunpack.c.0.s8 %v398
    %v400 = vlaneseq
    %v401 = vshrl.u32 %v400, 7
    %v402 = vsub.s32 %v399, %v401
    %v403 = vrot.slane %v396, %v402
    %v405 = vunpack.c.l.s4 1966171168
    %v406 = vunpack.c.0.s8 %v405
    %v407 = vlaneseq
    %v408 = vshrl.u32 %v407, 7
    %v409 = vsub.s32 %v406, %v408
    %v410 = vrot.slane %v403, %v409
    %v412 = vlaneseq
    %vm413 = vcmp.ge.s32.totalorder %v412, 0
    %vm414 = vcmp.lt.s32.totalorder %v412, 256
    %vm415 = vmand %vm413, %vm414
    %416 = vst.msk [vmem:[#allocation3] sm:$0x3] %vm415, %v410
    // Predicated region
    $region30: #{net_pred_wrapper.1} parent=1 // pred_check
      _
    $region31: #{net_pred_wrapper.1} parent=1 // pred_check_branch
      %418 = sbr.rel (0) target = $region33
    $region32: #{net_pred_wrapper.1} parent=1 // pred_region
      %s420 = ssub.s32 32, 32
      %421 = vsyncadd [#allocation4], %s420
      %s423 = sshll.u32 [#allocation3], 4
      %s424 = int_to_ptr.vmem [resolvable:$true] %s423
      %426 = dma.vmem_to_hbm [thread:$0]  %s424, 32, %s7, [#allocation4]
    $region33: #{net_pred_wrapper.1} parent=1 // pred_fallthru
      _
    // Predicated region
    $region34: #{net_pred_wrapper.1} parent=1 // pred_check
      _
    $region35: #{net_pred_wrapper.1} parent=1 // pred_check_branch
      %428 = sbr.rel (0) target = $region37
    $region36: #{net_pred_wrapper.1} parent=1 // pred_region
      %429 = dma.done [#allocation4], 32
    $region37: #{net_pred_wrapper.1} parent=1 // pred_fallthru
      _
    %430 = vsyncpa [#allocation4], 1

</llo_original>
